<compile_context>
chip_gen: v6e
topology: v6e:2x2x1
jax: 0.10.0
libtpu: 0.0.40
codegen_flags: <defaults>
</compile_context>

<pallas_src>
import functools

import numpy as np
import jax
import jax.numpy as jnp
from jax.experimental import pallas as pl
from jax.experimental.pallas import tpu as pltpu


def _round_up(x, m):
    return (x + m - 1) // m * m


# ---------------------------------------------------------------------------
# Kernel 1: concat + 1x1 conv + BN + ReLU + global avg pool + SE MLP + sigmoid
# ---------------------------------------------------------------------------
def _fuse_conv_pool_se_kernel(x1_ref, x2_ref, w1a_ref, w1b_ref, sc_ref, bi_ref,
                              wse1_ref, wse2_ref, fm_ref, se_ref, *, inv_hw):
    # x1_ref:(1,T,C1) bf16   x2_ref:(1,T,C2) bf16
    # w1a:(C1,Cp) bf16       w1b:(C2,Cp) bf16      sc/bi:(1,Cp) f32
    # wse1:(Cp,Crp) f32      wse2:(Crp,Cp) f32
    # fm_ref:(1,T,Cp) bf16   se_ref:(1,1,Cp) f32 (resident accumulator over t)
    t = pl.program_id(1)

    # concat([x1,x2], channel) @ W1  ==  x1 @ W1[:C1] + x2 @ W1[C1:]
    pre = (jnp.dot(x1_ref[0], w1a_ref[...], preferred_element_type=jnp.float32)
           + jnp.dot(x2_ref[0], w1b_ref[...], preferred_element_type=jnp.float32))
    fm = jnp.maximum(pre * sc_ref[...] + bi_ref[...], 0.0)          # folded BN + ReLU
    fm_ref[0] = fm.astype(fm_ref.dtype)

    @pl.when(t == 0)
    def _():
        se_ref[...] = jnp.zeros_like(se_ref)

    se_ref[0] += jnp.sum(fm, axis=0, keepdims=True)                  # pool accumulate

    @pl.when(t == pl.num_programs(1) - 1)
    def _():
        p = se_ref[0] * inv_hw                                       # (1,Cp) mean
        h = jnp.maximum(
            jnp.dot(p, wse1_ref[...], preferred_element_type=jnp.float32), 0.0)
        s = jnp.dot(h, wse2_ref[...], preferred_element_type=jnp.float32)
        se_ref[0] = 1.0 + 1.0 / (1.0 + jnp.exp(-s))                  # 1 + sigmoid


def fused_conv_bn_relu_pool_se(x1f, x2f, w1a, w1b, bn_scale, bn_bias,
                               wse1, wse2, *, hw_tile):
    N, HW, C1 = x1f.shape
    C2 = x2f.shape[2]
    Cp = w1a.shape[1]
    Crp = wse1.shape[1]
    assert HW % hw_tile == 0
    n_t = HW // hw_tile
    kernel = functools.partial(_fuse_conv_pool_se_kernel, inv_hw=1.0 / HW)
    return pl.pallas_call(
        kernel,
        out_shape=(jax.ShapeDtypeStruct((N, HW, Cp), jnp.bfloat16),   # fm (bf16 HBM)
                   jax.ShapeDtypeStruct((N, 1, Cp), jnp.float32)),    # 1 + sigmoid(se)
        grid=(N, n_t),
        in_specs=[
            pl.BlockSpec((1, hw_tile, C1), lambda n, t: (n, t, 0)),
            pl.BlockSpec((1, hw_tile, C2), lambda n, t: (n, t, 0)),
            pl.BlockSpec((C1, Cp), lambda n, t: (0, 0)),
            pl.BlockSpec((C2, Cp), lambda n, t: (0, 0)),
            pl.BlockSpec((1, Cp), lambda n, t: (0, 0)),
            pl.BlockSpec((1, Cp), lambda n, t: (0, 0)),
            pl.BlockSpec((Cp, Crp), lambda n, t: (0, 0)),
            pl.BlockSpec((Crp, Cp), lambda n, t: (0, 0)),
        ],
        out_specs=(pl.BlockSpec((1, hw_tile, Cp), lambda n, t: (n, t, 0)),
                   pl.BlockSpec((1, 1, Cp), lambda n, t: (n, 0, 0))),
        compiler_params=pltpu.CompilerParams(
            dimension_semantics=("parallel", "arbitrary")),
    )(x1f, x2f, w1a, w1b, bn_scale, bn_bias, wse1, wse2)


# ---------------------------------------------------------------------------
# Kernel 2: elementwise rescale   out = fm * (1 + se)
# ---------------------------------------------------------------------------
def _rescale_kernel(se_ref, fm_ref, o_ref):
    # se:(1,1,Cp) f32   fm:(1,T,Cp) bf16   o:(1,T,Cp) f32
    o_ref[0] = (fm_ref[0].astype(jnp.float32) * se_ref[0]).astype(o_ref.dtype)


def rescale(se_mult, fm, *, hw_tile):
    N, HW, Cp = fm.shape
    n_t = HW // hw_tile
    return pl.pallas_call(
        _rescale_kernel,
        out_shape=jax.ShapeDtypeStruct((N, HW, Cp), jnp.float32),
        grid=(N, n_t),
        in_specs=[
            pl.BlockSpec((1, 1, Cp), lambda n, t: (n, 0, 0)),
            pl.BlockSpec((1, hw_tile, Cp), lambda n, t: (n, t, 0)),
        ],
        out_specs=pl.BlockSpec((1, hw_tile, Cp), lambda n, t: (n, t, 0)),
        compiler_params=pltpu.CompilerParams(
            dimension_semantics=("parallel", "parallel")),
    )(se_mult, fm)


# ---------------------------------------------------------------------------
# Parameters (deterministic synthetic, BN folded for eval) + forward + reference
# ---------------------------------------------------------------------------
def init_params(key, c1, c2, out_planes, reduction=1, bn_eps=1e-5, lane=128):
    cin = c1 + c2
    cr = max(out_planes // reduction, 1)
    cp = _round_up(out_planes, lane)
    crp = _round_up(cr, lane)
    ks = jax.random.split(key, 7)

    w1 = 0.1 * jax.random.normal(ks[0], (cin, out_planes), jnp.float32)   # conv_1x1 W^T
    gamma = 1.0 + 0.1 * jax.random.normal(ks[1], (out_planes,), jnp.float32)
    beta = 0.1 * jax.random.normal(ks[2], (out_planes,), jnp.float32)
    mean = 0.1 * jax.random.normal(ks[3], (out_planes,), jnp.float32)
    var = jnp.abs(jax.random.normal(ks[4], (out_planes,), jnp.float32)) + 0.5
    scale = gamma / jnp.sqrt(var + bn_eps)
    bias = beta - mean * scale
    wse1 = 0.1 * jax.random.normal(ks[5], (out_planes, cr), jnp.float32)  # SE squeeze
    wse2 = 0.1 * jax.random.normal(ks[6], (cr, out_planes), jnp.float32)  # SE excite

    pad_c = cp - out_planes
    w1_p = jnp.pad(w1, ((0, 0), (0, pad_c)))
    return dict(
        out_planes=out_planes, c1=c1,
        # padded operands for the kernels (matmul operands in bf16, BN/SE params in f32)
        w1a=w1_p[:c1].astype(jnp.bfloat16),
        w1b=w1_p[c1:].astype(jnp.bfloat16),
        bn_scale=jnp.pad(scale, (0, pad_c), constant_values=1.0).reshape(1, cp),
        bn_bias=jnp.pad(bias, (0, pad_c)).reshape(1, cp),
        wse1=jnp.pad(wse1, ((0, pad_c), (0, crp - cr))),
        wse2=jnp.pad(wse2, ((0, crp - cr), (0, pad_c))),
        # raw f32 copies for the pure-JAX reference
        w1_raw=w1, bn_scale_raw=scale, bn_bias_raw=bias,
        wse1_raw=wse1, wse2_raw=wse2,
    )


def feature_fusion_forward(x1_nchw, x2_nchw, params, *, hw_tile=128):
    N, C1, H, W = x1_nchw.shape
    C2 = x2_nchw.shape[1]
    HW = H * W
    Co = params['out_planes']
    # glue: NCHW -> (N, HW, C) channel-last, bf16 MXU operands
    x1f = jnp.transpose(x1_nchw, (0, 2, 3, 1)).reshape(N, HW, C1).astype(jnp.bfloat16)
    x2f = jnp.transpose(x2_nchw, (0, 2, 3, 1)).reshape(N, HW, C2).astype(jnp.bfloat16)

    fm, se_mult = fused_conv_bn_relu_pool_se(
        x1f, x2f, params['w1a'], params['w1b'],
        params['bn_scale'], params['bn_bias'],
        params['wse1'], params['wse2'], hw_tile=hw_tile)
    out = rescale(se_mult, fm, hw_tile=hw_tile)

    out = out[:, :, :Co].reshape(N, H, W, Co)          # drop lane padding (glue)
    return jnp.transpose(out, (0, 3, 1, 2))            # back to NCHW


def reference_forward(x1_nchw, x2_nchw, params):
    """Pure-JAX reference mirroring the kernel math (bf16 matmul operands / bf16 fm
    roundtrip, f32 accumulation)."""
    N, C1, H, W = x1_nchw.shape
    C2 = x2_nchw.shape[1]
    Co = params['out_planes']
    HW = H * W
    x1f = jnp.transpose(x1_nchw, (0, 2, 3, 1)).reshape(N, HW, C1).astype(jnp.bfloat16)
    x2f = jnp.transpose(x2_nchw, (0, 2, 3, 1)).reshape(N, HW, C2).astype(jnp.bfloat16)
    w1 = params['w1_raw'].astype(jnp.bfloat16)
    pre = (jnp.einsum('npc,cm->npm', x1f, w1[:C1], preferred_element_type=jnp.float32)
           + jnp.einsum('npc,cm->npm', x2f, w1[C1:], preferred_element_type=jnp.float32))
    fm = jnp.maximum(pre * params['bn_scale_raw'] + params['bn_bias_raw'], 0.0)
    pooled = jnp.mean(fm, axis=1)                                     # (N, Co) f32
    h = jnp.maximum(jnp.dot(pooled, params['wse1_raw'],
                            preferred_element_type=jnp.float32), 0.0)
    s = jnp.dot(h, params['wse2_raw'], preferred_element_type=jnp.float32)
    se = 1.0 / (1.0 + jnp.exp(-s))
    fm_b = fm.astype(jnp.bfloat16).astype(jnp.float32)                # bf16 HBM roundtrip
    out = fm_b * (1.0 + se[:, None, :])                               # fm + fm*se
    return jnp.transpose(out.reshape(N, H, W, Co), (0, 3, 1, 2))


if __name__ == "__main__":
    N, C1, C2, H, W = 2, 16, 16, 16, 16          # in_planes = C1 + C2 = 32
    out_planes, reduction = 32, 1

    key = jax.random.PRNGKey(0)
    k1, k2, kp = jax.random.split(key, 3)
    x1 = jax.random.normal(k1, (N, C1, H, W), jnp.float32)   # NCHW, like PyTorch
    x2 = jax.random.normal(k2, (N, C2, H, W), jnp.float32)
    params = init_params(kp, C1, C2, out_planes, reduction)

    out = jax.block_until_ready(feature_fusion_forward(x1, x2, params, hw_tile=128))
    ref = jax.block_until_ready(reference_forward(x1, x2, params))

    assert out.shape == (N, out_planes, H, W), out.shape
    err = float(np.max(np.abs(np.asarray(out) - np.asarray(ref))))
    assert np.allclose(np.asarray(out), np.asarray(ref), atol=2e-3, rtol=2e-3), err
    print("KERNEL_OK")
</pallas_src>

<mosaic_0001>
module attributes {stable_mosaic.version = 11 : i64} {
  func.func @_fuse_conv_pool_se_kernel(%arg0: i32, %arg1: i32, %arg2: memref<1x128x16xbf16, #tpu.memory_space<vmem>>, %arg3: memref<1x128x16xbf16, #tpu.memory_space<vmem>>, %arg4: memref<16x128xbf16, #tpu.memory_space<vmem>>, %arg5: memref<16x128xbf16, #tpu.memory_space<vmem>>, %arg6: memref<1x128xf32, #tpu.memory_space<vmem>>, %arg7: memref<1x128xf32, #tpu.memory_space<vmem>>, %arg8: memref<128x128xf32, #tpu.memory_space<vmem>>, %arg9: memref<128x128xf32, #tpu.memory_space<vmem>>, %arg10: memref<1x128x128xbf16, #tpu.memory_space<vmem>>, %arg11: memref<1x1x128xf32, #tpu.memory_space<vmem>>) attributes {dimension_semantics = [#tpu.dimension_semantics<parallel>, #tpu.dimension_semantics<arbitrary>], iteration_bounds = array<i64: 2, 2>, scalar_prefetch = 0 : i64, scratch_operands = 0 : i64, tpu.core_type = #tpu.core_type<tc>, window_params = [{transform_indices = @transform_0, window_bounds = array<i64: 1, 128, 16>}, {transform_indices = @transform_1, window_bounds = array<i64: 1, 128, 16>}, {pipeline_mode = #tpu.pipeline_mode<synchronous>, transform_indices = @transform_2, window_bounds = array<i64: 16, 128>}, {pipeline_mode = #tpu.pipeline_mode<synchronous>, transform_indices = @transform_3, window_bounds = array<i64: 16, 128>}, {pipeline_mode = #tpu.pipeline_mode<synchronous>, transform_indices = @transform_4, window_bounds = array<i64: 1, 128>}, {pipeline_mode = #tpu.pipeline_mode<synchronous>, transform_indices = @transform_5, window_bounds = array<i64: 1, 128>}, {pipeline_mode = #tpu.pipeline_mode<synchronous>, transform_indices = @transform_6, window_bounds = array<i64: 128, 128>}, {pipeline_mode = #tpu.pipeline_mode<synchronous>, transform_indices = @transform_7, window_bounds = array<i64: 128, 128>}, {transform_indices = @transform_8, window_bounds = array<i64: 1, 128, 128>}, {transform_indices = @transform_9, window_bounds = array<i64: 1, 1, 128>}]} {
    %c0 = arith.constant 0 : index
    %c0_0 = arith.constant 0 : index
    %c0_1 = arith.constant 0 : index
    %0 = vector.load %arg2[%c0, %c0_0, %c0_1] : memref<1x128x16xbf16, #tpu.memory_space<vmem>>, vector<1x128x16xbf16>
    %1 = vector.shape_cast %0 : vector<1x128x16xbf16> to vector<128x16xbf16>
    %c0_2 = arith.constant 0 : index
    %c0_3 = arith.constant 0 : index
    %2 = vector.load %arg4[%c0_2, %c0_3] : memref<16x128xbf16, #tpu.memory_space<vmem>>, vector<16x128xbf16>
    %cst = arith.constant dense<0.000000e+00> : vector<128x128xf32>
    %3 = tpu.matmul %1, %2, %cst {dimension_numbers = #tpu.dot_dimension_numbers<[1], [0], [0], [1], [0, 0, 1, 1], [], []>} : vector<128x16xbf16>, vector<16x128xbf16>, vector<128x128xf32> -> vector<128x128xf32>
    %c0_4 = arith.constant 0 : index
    %c0_5 = arith.constant 0 : index
    %c0_6 = arith.constant 0 : index
    %4 = vector.load %arg3[%c0_4, %c0_5, %c0_6] : memref<1x128x16xbf16, #tpu.memory_space<vmem>>, vector<1x128x16xbf16>
    %5 = vector.shape_cast %4 : vector<1x128x16xbf16> to vector<128x16xbf16>
    %c0_7 = arith.constant 0 : index
    %c0_8 = arith.constant 0 : index
    %6 = vector.load %arg5[%c0_7, %c0_8] : memref<16x128xbf16, #tpu.memory_space<vmem>>, vector<16x128xbf16>
    %cst_9 = arith.constant dense<0.000000e+00> : vector<128x128xf32>
    %7 = tpu.matmul %5, %6, %cst_9 {dimension_numbers = #tpu.dot_dimension_numbers<[1], [0], [0], [1], [0, 0, 1, 1], [], []>} : vector<128x16xbf16>, vector<16x128xbf16>, vector<128x128xf32> -> vector<128x128xf32>
    %8 = arith.addf %3, %7 : vector<128x128xf32>
    %c0_10 = arith.constant 0 : index
    %c0_11 = arith.constant 0 : index
    %9 = vector.load %arg6[%c0_10, %c0_11] : memref<1x128xf32, #tpu.memory_space<vmem>>, vector<1x128xf32>
    %10 = vector.broadcast %9 : vector<1x128xf32> to vector<128x128xf32>
    %11 = arith.mulf %8, %10 : vector<128x128xf32>
    %c0_12 = arith.constant 0 : index
    %c0_13 = arith.constant 0 : index
    %12 = vector.load %arg7[%c0_12, %c0_13] : memref<1x128xf32, #tpu.memory_space<vmem>>, vector<1x128xf32>
    %13 = vector.broadcast %12 : vector<1x128xf32> to vector<128x128xf32>
    %14 = arith.addf %11, %13 : vector<128x128xf32>
    %cst_14 = arith.constant 0.000000e+00 : f32
    %15 = vector.broadcast %cst_14 : f32 to vector<128x128xf32>
    %16 = arith.maximumf %14, %15 : vector<128x128xf32>
    %17 = arith.truncf %16 : vector<128x128xf32> to vector<128x128xbf16>
    %c0_15 = arith.constant 0 : index
    %c0_16 = arith.constant 0 : index
    %c0_17 = arith.constant 0 : index
    %18 = vector.load %arg10[%c0_15, %c0_16, %c0_17] : memref<1x128x128xbf16, #tpu.memory_space<vmem>>, vector<1x128x128xbf16>
    %19 = vector.shape_cast %18 : vector<1x128x128xbf16> to vector<128x128xbf16>
    %20 = vector.shape_cast %17 : vector<128x128xbf16> to vector<1x128x128xbf16>
    tpu.vector_store %arg10[%c0_15, %c0_16, %c0_17], %20 {strides = array<i32>} : memref<1x128x128xbf16, #tpu.memory_space<vmem>>, vector<1x128x128xbf16>,
    %c0_i32 = arith.constant 0 : i32
    %21 = arith.cmpi eq, %arg1, %c0_i32 : i32
    %22 = arith.extui %21 : i1 to i32
    %c0_i32_18 = arith.constant 0 : i32
    %23 = arith.cmpi ne, %22, %c0_i32_18 : i32
    scf.if %23 {
      %cst_27 = arith.constant 0.000000e+00 : f32
      %35 = vector.broadcast %cst_27 : f32 to vector<1x1x128xf32>
      %c0_28 = arith.constant 0 : index
      %c0_29 = arith.constant 0 : index
      %c0_30 = arith.constant 0 : index
      %36 = vector.load %arg11[%c0_28, %c0_29, %c0_30] : memref<1x1x128xf32, #tpu.memory_space<vmem>>, vector<1x1x128xf32>
      tpu.vector_store %arg11[%c0_28, %c0_29, %c0_30], %35 {strides = array<i32>} : memref<1x1x128xf32, #tpu.memory_space<vmem>>, vector<1x1x128xf32>,
    } else {
    }
    %c0_19 = arith.constant 0 : index
    %c0_20 = arith.constant 0 : index
    %c0_21 = arith.constant 0 : index
    %24 = vector.load %arg11[%c0_19, %c0_20, %c0_21] : memref<1x1x128xf32, #tpu.memory_space<vmem>>, vector<1x1x128xf32>
    %25 = vector.shape_cast %24 : vector<1x1x128xf32> to vector<1x128xf32>
    %cst_22 = arith.constant dense<0.000000e+00> : vector<128xf32>
    %26 = vector.multi_reduction <add>, %16, %cst_22 [0] : vector<128x128xf32> to vector<128xf32>
    %27 = vector.shape_cast %26 : vector<128xf32> to vector<1x128xf32>
    %28 = arith.addf %25, %27 : vector<1x128xf32>
    %c0_23 = arith.constant 0 : index
    %c0_24 = arith.constant 0 : index
    %c0_25 = arith.constant 0 : index
    %29 = vector.load %arg11[%c0_23, %c0_24, %c0_25] : memref<1x1x128xf32, #tpu.memory_space<vmem>>, vector<1x1x128xf32>
    %30 = vector.shape_cast %29 : vector<1x1x128xf32> to vector<1x128xf32>
    %31 = vector.shape_cast %28 : vector<1x128xf32> to vector<1x1x128xf32>
    tpu.vector_store %arg11[%c0_23, %c0_24, %c0_25], %31 {strides = array<i32>} : memref<1x1x128xf32, #tpu.memory_space<vmem>>, vector<1x1x128xf32>,
    %c1_i32 = arith.constant 1 : i32
    %32 = arith.cmpi eq, %arg1, %c1_i32 : i32
    %33 = arith.extui %32 : i1 to i32
    %c0_i32_26 = arith.constant 0 : i32
    %34 = arith.cmpi ne, %33, %c0_i32_26 : i32
    scf.if %34 {
      %c0_27 = arith.constant 0 : index
      %c0_28 = arith.constant 0 : index
      %c0_29 = arith.constant 0 : index
      %35 = vector.load %arg11[%c0_27, %c0_28, %c0_29] : memref<1x1x128xf32, #tpu.memory_space<vmem>>, vector<1x1x128xf32>
      %36 = vector.shape_cast %35 : vector<1x1x128xf32> to vector<1x128xf32>
      %cst_30 = arith.constant 3.906250e-03 : f32
      %37 = vector.broadcast %cst_30 : f32 to vector<1x128xf32>
      %38 = arith.mulf %36, %37 : vector<1x128xf32>
      %c0_31 = arith.constant 0 : index
      %c0_32 = arith.constant 0 : index
      %39 = vector.load %arg8[%c0_31, %c0_32] : memref<128x128xf32, #tpu.memory_space<vmem>>, vector<128x128xf32>
      %cst_33 = arith.constant dense<0.000000e+00> : vector<1x128xf32>
      %40 = tpu.matmul %38, %39, %cst_33 {dimension_numbers = #tpu.dot_dimension_numbers<[1], [0], [0], [1], [0, 0, 1, 1], [], []>} : vector<1x128xf32>, vector<128x128xf32>, vector<1x128xf32> -> vector<1x128xf32>
      %cst_34 = arith.constant 0.000000e+00 : f32
      %41 = vector.broadcast %cst_34 : f32 to vector<1x128xf32>
      %42 = arith.maximumf %40, %41 : vector<1x128xf32>
      %c0_35 = arith.constant 0 : index
      %c0_36 = arith.constant 0 : index
      %43 = vector.load %arg9[%c0_35, %c0_36] : memref<128x128xf32, #tpu.memory_space<vmem>>, vector<128x128xf32>
      %cst_37 = arith.constant dense<0.000000e+00> : vector<1x128xf32>
      %44 = tpu.matmul %42, %43, %cst_37 {dimension_numbers = #tpu.dot_dimension_numbers<[1], [0], [0], [1], [0, 0, 1, 1], [], []>} : vector<1x128xf32>, vector<128x128xf32>, vector<1x128xf32> -> vector<1x128xf32>
      %cst_38 = arith.constant 0.000000e+00 : f32
      %45 = vector.broadcast %cst_38 : f32 to vector<1x128xf32>
      %46 = arith.subf %45, %44 : vector<1x128xf32>
      %47 = math.exp %46 : vector<1x128xf32>
      %cst_39 = arith.constant 1.000000e+00 : f32
      %48 = vector.broadcast %cst_39 : f32 to vector<1x128xf32>
      %49 = arith.addf %48, %47 : vector<1x128xf32>
      %cst_40 = arith.constant 1.000000e+00 : f32
      %50 = vector.broadcast %cst_40 : f32 to vector<1x128xf32>
      %51 = arith.divf %50, %49 : vector<1x128xf32>
      %cst_41 = arith.constant 1.000000e+00 : f32
      %52 = vector.broadcast %cst_41 : f32 to vector<1x128xf32>
      %53 = arith.addf %52, %51 : vector<1x128xf32>
      %c0_42 = arith.constant 0 : index
      %c0_43 = arith.constant 0 : index
      %c0_44 = arith.constant 0 : index
      %54 = vector.load %arg11[%c0_42, %c0_43, %c0_44] : memref<1x1x128xf32, #tpu.memory_space<vmem>>, vector<1x1x128xf32>
      %55 = vector.shape_cast %54 : vector<1x1x128xf32> to vector<1x128xf32>
      %56 = vector.shape_cast %53 : vector<1x128xf32> to vector<1x1x128xf32>
      tpu.vector_store %arg11[%c0_42, %c0_43, %c0_44], %56 {strides = array<i32>} : memref<1x1x128xf32, #tpu.memory_space<vmem>>, vector<1x1x128xf32>,
    } else {
    }
    return
  }
  func.func @transform_0(%arg0: i32, %arg1: i32) -> (i32, i32, i32) {
    %c0_i32 = arith.constant 0 : i32
    %c0_i32_0 = arith.constant 0 : i32
    return %arg0, %arg1, %c0_i32 : i32, i32, i32
  }
  func.func @transform_1(%arg0: i32, %arg1: i32) -> (i32, i32, i32) {
    %c0_i32 = arith.constant 0 : i32
    %c0_i32_0 = arith.constant 0 : i32
    return %arg0, %arg1, %c0_i32 : i32, i32, i32
  }
  func.func @transform_2(%arg0: i32, %arg1: i32) -> (i32, i32) {
    %c0_i32 = arith.constant 0 : i32
    %c0_i32_0 = arith.constant 0 : i32
    %c0_i32_1 = arith.constant 0 : i32
    return %c0_i32, %c0_i32_0 : i32, i32
  }
  func.func @transform_3(%arg0: i32, %arg1: i32) -> (i32, i32) {
    %c0_i32 = arith.constant 0 : i32
    %c0_i32_0 = arith.constant 0 : i32
    %c0_i32_1 = arith.constant 0 : i32
    return %c0_i32, %c0_i32_0 : i32, i32
  }
  func.func @transform_4(%arg0: i32, %arg1: i32) -> (i32, i32) {
    %c0_i32 = arith.constant 0 : i32
    %c0_i32_0 = arith.constant 0 : i32
    %c0_i32_1 = arith.constant 0 : i32
    return %c0_i32, %c0_i32_0 : i32, i32
  }
  func.func @transform_5(%arg0: i32, %arg1: i32) -> (i32, i32) {
    %c0_i32 = arith.constant 0 : i32
    %c0_i32_0 = arith.constant 0 : i32
    %c0_i32_1 = arith.constant 0 : i32
    return %c0_i32, %c0_i32_0 : i32, i32
  }
  func.func @transform_6(%arg0: i32, %arg1: i32) -> (i32, i32) {
    %c0_i32 = arith.constant 0 : i32
    %c0_i32_0 = arith.constant 0 : i32
    %c0_i32_1 = arith.constant 0 : i32
    return %c0_i32, %c0_i32_0 : i32, i32
  }
  func.func @transform_7(%arg0: i32, %arg1: i32) -> (i32, i32) {
    %c0_i32 = arith.constant 0 : i32
    %c0_i32_0 = arith.constant 0 : i32
    %c0_i32_1 = arith.constant 0 : i32
    return %c0_i32, %c0_i32_0 : i32, i32
  }
  func.func @transform_8(%arg0: i32, %arg1: i32) -> (i32, i32, i32) {
    %c0_i32 = arith.constant 0 : i32
    %c0_i32_0 = arith.constant 0 : i32
    return %arg0, %arg1, %c0_i32 : i32, i32, i32
  }
  func.func @transform_9(%arg0: i32, %arg1: i32) -> (i32, i32, i32) {
    %c0_i32 = arith.constant 0 : i32
    %c0_i32_0 = arith.constant 0 : i32
    %c0_i32_1 = arith.constant 0 : i32
    return %arg0, %c0_i32, %c0_i32_0 : i32, i32, i32
  }
}

</mosaic_0001>

<llo_original>
// kernel: tpu_custom_call.1
$region0: #{tpu_custom_call.1}
  #allocation0 [shape = 'u32[]', space=smem, size = 0x4, offset = 0x4, fixed_abs, tag = 'smem constant byte address 0x4 - core index']
  #allocation1 [shape = 'u32[144,128]{1,0:T(1,128)}', space=vmem, size = 0x12000, scoped, tag = 'internal scratch']
  %s0 = inlined_call_operand.vmem [shape: bf16[2,256,16], index: 0, kind: input, shape index: {}]
  %s1 = inlined_call_operand.vmem [shape: bf16[2,256,16], index: 1, kind: input, shape index: {}]
  %s2 = inlined_call_operand.vmem [shape: bf16[16,128], index: 2, kind: input, shape index: {}]
  %s3 = inlined_call_operand.vmem [shape: bf16[16,128], index: 3, kind: input, shape index: {}]
  %s4 = inlined_call_operand.vmem [shape: f32[1,128], index: 4, kind: input, shape index: {}]
  %s5 = inlined_call_operand.vmem [shape: f32[1,128], index: 5, kind: input, shape index: {}]
  %s6 = inlined_call_operand.vmem [shape: f32[128,128], index: 6, kind: input, shape index: {}]
  %s7 = inlined_call_operand.vmem [shape: f32[128,128], index: 7, kind: input, shape index: {}]
  %s8 = inlined_call_operand.hbm [shape: bf16[2,256,128], index: 8, kind: output, shape index: {0}]
  %s9 = inlined_call_operand.hbm [shape: f32[2,1,128], index: 9, kind: output, shape index: {1}]
  %10 = xla_tuple %s8, %s9
  %s11 = sld [smem:[#allocation0]]
  $region81: #{tpu_custom_call.1} parent=0
    _
  %s13 = ssub.s32 1, %s11
  %s14 = scalar_select 0, %s13, %s11
  $region1: #{tpu_custom_call.1} parent=0
    #allocation2 [shape = 'u8[65536]{0}', space=vmem, size = 0x10000, scoped, tag = 'output window, operand 0']
    #allocation3 [shape = 's32[2]{0}', space=sflag, size = 0x8, scoped, tag = 'scoped memory for tpu_custom_call.1']
    #allocation4 [shape = 'u8[1024]{0}', space=vmem, size = 0x400, scoped, tag = 'output window, operand 1']
    #allocation5 [shape = 's32[2]{0}', space=sflag, size = 0x8, scoped, tag = 'scoped memory for tpu_custom_call.1']
    %15 = vsyncpa [#allocation3], 0
    %s16 = scalar_lea.sflag [#allocation3], 1
    %17 = vsyncpa %s16, 0
    %18 = vsyncpa [#allocation5], 0
    %s19 = scalar_lea.sflag [#allocation5], 1
    %20 = vsyncpa %s19, 0
    loop: start=0, step=1, limit=6
    $region2: #{tpu_custom_call.1} parent=1 // loop_pre_header
      _
    $region3: #{tpu_custom_call.1} parent=1 // loop_header
      %s22 = sphi 0, %s26
      %p23 = scmp.ge.s32.totalorder %s22, 6
      %s29 = sphi 0, %s41
      %s30 = sphi 0, %s37
      %s31 = sphi 0, %s29
      %s32 = sphi 0, %s30
      %s33 = sphi 0, %s31
      %s34 = sphi 0, %s32
      %s46 = sphi 0, %s48
      %s49 = sphi 0, %s46
      %s50 = sphi 0, %s49
      %s66 = sphi 0, %s50
      %s74 = sphi 0, %s76
      %s77 = sphi 0, %s74
      %s78 = sphi 0, %s77
      %s94 = sphi 0, %s78
      %s98 = sphi 0, %s98
      %s100 = sphi 0, %s98
      %s101 = sphi 0, %s100
      %s115 = sphi 0, %s101
      %s119 = sphi 0, %s119
      %s121 = sphi 0, %s119
      %s122 = sphi 0, %s121
      %s136 = sphi 0, %s122
      %s140 = sphi 0, %s140
      %s142 = sphi 0, %s140
      %s143 = sphi 0, %s142
      %s157 = sphi 0, %s143
      %s161 = sphi 0, %s161
      %s163 = sphi 0, %s161
      %s164 = sphi 0, %s163
      %s178 = sphi 0, %s164
      %s182 = sphi 0, %s182
      %s184 = sphi 0, %s182
      %s185 = sphi 0, %s184
      %s199 = sphi 0, %s185
      %s203 = sphi 0, %s203
      %s205 = sphi 0, %s203
      %s206 = sphi 0, %s205
      %s220 = sphi 0, %s206
      %s228 = sphi 0, %s230
      %s231 = sphi 0, %s228
      %s232 = sphi 0, %s231
      %s248 = sphi 0, %s232
      %s254 = sphi 0, %s256
      %s257 = sphi 0, %s254
      %s258 = sphi 0, %s257
      %s274 = sphi 0, %s258
    $region4: #{tpu_custom_call.1} parent=1 // loop_header_branch
      %25 = sbr.rel (%p23) target = $region8
    $region5: #{tpu_custom_call.1} parent=1 // loop_body
      %s27 = ssub.s32 %s22, 1
      %s28 = ssub.s32 %s22, 2
      %s35 = sadd.s32 1, %s30
      %p36 = scmp.ge.s32.totalorder %s35, 2
      %s37 = scalar_select %p36, 0, %s35
      %s38 = sadd.s32 1, %s29
      %s39 = scalar_select %p36, %s38, %s29
      %p40 = scmp.ge.s32.totalorder %s39, 2
      %s41 = scalar_select %p40, 0, %s39
      %s42 = ssub.s32 %s29, %s41
      %s43 = ssub.s32 %s30, %s37
      %s44 = sor.u32 %s42, %s43
      %p45 = scmp.eq.s32.totalorder %s44, 0
      %s47 = sadd.s32 %s46, 1
      %s48 = scalar_select %p45, %s46, %s47
      %p51 = pneg %p45
      %p52 = scmp.eq.s32.totalorder %s22, 3
      %p53 = por %p51, %p52
      %p54 = scmp.ne.s32.totalorder %s46, %s49
      %p55 = scmp.eq.s32.totalorder %s22, 0
      %p56 = por %p54, %p55
      %p57 = scmp.ne.s32.totalorder %s46, %s49
      %p58 = scmp.eq.s32.totalorder %s27, 3
      %p59 = por %p57, %p58
      %p60 = scmp.ne.s32.totalorder %s49, %s50
      %p61 = scmp.eq.s32.totalorder %s27, 0
      %p62 = por %p60, %p61
      %p63 = scmp.ne.s32.totalorder %s49, %s50
      %p64 = scmp.eq.s32.totalorder %s28, 3
      %p65 = por %p63, %p64
      %p67 = scmp.ne.s32.totalorder %s50, %s66
      %p68 = scmp.eq.s32.totalorder %s28, 0
      %p69 = por %p67, %p68
      %s70 = ssub.s32 %s29, %s41
      %s71 = ssub.s32 %s30, %s37
      %s72 = sor.u32 %s70, %s71
      %p73 = scmp.eq.s32.totalorder %s72, 0
      %s75 = sadd.s32 %s74, 1
      %s76 = scalar_select %p73, %s74, %s75
      %p79 = pneg %p73
      %p80 = scmp.eq.s32.totalorder %s22, 3
      %p81 = por %p79, %p80
      %p82 = scmp.ne.s32.totalorder %s74, %s77
      %p83 = scmp.eq.s32.totalorder %s22, 0
      %p84 = por %p82, %p83
      %p85 = scmp.ne.s32.totalorder %s74, %s77
      %p86 = scmp.eq.s32.totalorder %s27, 3
      %p87 = por %p85, %p86
      %p88 = scmp.ne.s32.totalorder %s77, %s78
      %p89 = scmp.eq.s32.totalorder %s27, 0
      %p90 = por %p88, %p89
      %p91 = scmp.ne.s32.totalorder %s77, %s78
      %p92 = scmp.eq.s32.totalorder %s28, 3
      %p93 = por %p91, %p92
      %p95 = scmp.ne.s32.totalorder %s78, %s94
      %p96 = scmp.eq.s32.totalorder %s28, 0
      %p97 = por %p95, %p96
      %s99 = sadd.s32 %s98, 1
      %p102 = scmp.eq.s32.totalorder %s22, 3
      %p103 = scmp.ne.s32.totalorder %s98, %s100
      %p104 = scmp.eq.s32.totalorder %s22, 0
      %p105 = por %p103, %p104
      %p106 = scmp.ne.s32.totalorder %s98, %s100
      %p107 = scmp.eq.s32.totalorder %s27, 3
      %p108 = por %p106, %p107
      %p109 = scmp.ne.s32.totalorder %s100, %s101
      %p110 = scmp.eq.s32.totalorder %s27, 0
      %p111 = por %p109, %p110
      %p112 = scmp.ne.s32.totalorder %s100, %s101
      %p113 = scmp.eq.s32.totalorder %s28, 3
      %p114 = por %p112, %p113
      %p116 = scmp.ne.s32.totalorder %s101, %s115
      %p117 = scmp.eq.s32.totalorder %s28, 0
      %p118 = por %p116, %p117
      %s120 = sadd.s32 %s119, 1
      %p123 = scmp.eq.s32.totalorder %s22, 3
      %p124 = scmp.ne.s32.totalorder %s119, %s121
      %p125 = scmp.eq.s32.totalorder %s22, 0
      %p126 = por %p124, %p125
      %p127 = scmp.ne.s32.totalorder %s119, %s121
      %p128 = scmp.eq.s32.totalorder %s27, 3
      %p129 = por %p127, %p128
      %p130 = scmp.ne.s32.totalorder %s121, %s122
      %p131 = scmp.eq.s32.totalorder %s27, 0
      %p132 = por %p130, %p131
      %p133 = scmp.ne.s32.totalorder %s121, %s122
      %p134 = scmp.eq.s32.totalorder %s28, 3
      %p135 = por %p133, %p134
      %p137 = scmp.ne.s32.totalorder %s122, %s136
      %p138 = scmp.eq.s32.totalorder %s28, 0
      %p139 = por %p137, %p138
      %s141 = sadd.s32 %s140, 1
      %p144 = scmp.eq.s32.totalorder %s22, 3
      %p145 = scmp.ne.s32.totalorder %s140, %s142
      %p146 = scmp.eq.s32.totalorder %s22, 0
      %p147 = por %p145, %p146
      %p148 = scmp.ne.s32.totalorder %s140, %s142
      %p149 = scmp.eq.s32.totalorder %s27, 3
      %p150 = por %p148, %p149
      %p151 = scmp.ne.s32.totalorder %s142, %s143
      %p152 = scmp.eq.s32.totalorder %s27, 0
      %p153 = por %p151, %p152
      %p154 = scmp.ne.s32.totalorder %s142, %s143
      %p155 = scmp.eq.s32.totalorder %s28, 3
      %p156 = por %p154, %p155
      %p158 = scmp.ne.s32.totalorder %s143, %s157
      %p159 = scmp.eq.s32.totalorder %s28, 0
      %p160 = por %p158, %p159
      %s162 = sadd.s32 %s161, 1
      %p165 = scmp.eq.s32.totalorder %s22, 3
      %p166 = scmp.ne.s32.totalorder %s161, %s163
      %p167 = scmp.eq.s32.totalorder %s22, 0
      %p168 = por %p166, %p167
      %p169 = scmp.ne.s32.totalorder %s161, %s163
      %p170 = scmp.eq.s32.totalorder %s27, 3
      %p171 = por %p169, %p170
      %p172 = scmp.ne.s32.totalorder %s163, %s164
      %p173 = scmp.eq.s32.totalorder %s27, 0
      %p174 = por %p172, %p173
      %p175 = scmp.ne.s32.totalorder %s163, %s164
      %p176 = scmp.eq.s32.totalorder %s28, 3
      %p177 = por %p175, %p176
      %p179 = scmp.ne.s32.totalorder %s164, %s178
      %p180 = scmp.eq.s32.totalorder %s28, 0
      %p181 = por %p179, %p180
      %s183 = sadd.s32 %s182, 1
      %p186 = scmp.eq.s32.totalorder %s22, 3
      %p187 = scmp.ne.s32.totalorder %s182, %s184
      %p188 = scmp.eq.s32.totalorder %s22, 0
      %p189 = por %p187, %p188
      %p190 = scmp.ne.s32.totalorder %s182, %s184
      %p191 = scmp.eq.s32.totalorder %s27, 3
      %p192 = por %p190, %p191
      %p193 = scmp.ne.s32.totalorder %s184, %s185
      %p194 = scmp.eq.s32.totalorder %s27, 0
      %p195 = por %p193, %p194
      %p196 = scmp.ne.s32.totalorder %s184, %s185
      %p197 = scmp.eq.s32.totalorder %s28, 3
      %p198 = por %p196, %p197
      %p200 = scmp.ne.s32.totalorder %s185, %s199
      %p201 = scmp.eq.s32.totalorder %s28, 0
      %p202 = por %p200, %p201
      %s204 = sadd.s32 %s203, 1
      %p207 = scmp.eq.s32.totalorder %s22, 3
      %p208 = scmp.ne.s32.totalorder %s203, %s205
      %p209 = scmp.eq.s32.totalorder %s22, 0
      %p210 = por %p208, %p209
      %p211 = scmp.ne.s32.totalorder %s203, %s205
      %p212 = scmp.eq.s32.totalorder %s27, 3
      %p213 = por %p211, %p212
      %p214 = scmp.ne.s32.totalorder %s205, %s206
      %p215 = scmp.eq.s32.totalorder %s27, 0
      %p216 = por %p214, %p215
      %p217 = scmp.ne.s32.totalorder %s205, %s206
      %p218 = scmp.eq.s32.totalorder %s28, 3
      %p219 = por %p217, %p218
      %p221 = scmp.ne.s32.totalorder %s206, %s220
      %p222 = scmp.eq.s32.totalorder %s28, 0
      %p223 = por %p221, %p222
      %s224 = ssub.s32 %s29, %s41
      %s225 = ssub.s32 %s30, %s37
      %s226 = sor.u32 %s224, %s225
      %p227 = scmp.eq.s32.totalorder %s226, 0
      %s229 = sadd.s32 %s228, 1
      %s230 = scalar_select %p227, %s228, %s229
      %p233 = pneg %p227
      %p234 = scmp.eq.s32.totalorder %s22, 3
      %p235 = por %p233, %p234
      %p236 = scmp.ne.s32.totalorder %s228, %s231
      %p237 = scmp.eq.s32.totalorder %s22, 0
      %p238 = por %p236, %p237
      %p239 = scmp.ne.s32.totalorder %s228, %s231
      %p240 = scmp.eq.s32.totalorder %s27, 3
      %p241 = por %p239, %p240
      %p242 = scmp.ne.s32.totalorder %s231, %s232
      %p243 = scmp.eq.s32.totalorder %s27, 0
      %p244 = por %p242, %p243
      %p245 = scmp.ne.s32.totalorder %s231, %s232
      %p246 = scmp.eq.s32.totalorder %s28, 3
      %p247 = por %p245, %p246
      %p249 = scmp.ne.s32.totalorder %s232, %s248
      %p250 = scmp.eq.s32.totalorder %s28, 0
      %p251 = por %p249, %p250
      %s252 = ssub.s32 %s29, %s41
      %p253 = scmp.eq.s32.totalorder %s252, 0
      %s255 = sadd.s32 %s254, 1
      %s256 = scalar_select %p253, %s254, %s255
      %p259 = pneg %p253
      %p260 = scmp.eq.s32.totalorder %s22, 3
      %p261 = por %p259, %p260
      %p262 = scmp.ne.s32.totalorder %s254, %s257
      %p263 = scmp.eq.s32.totalorder %s22, 0
      %p264 = por %p262, %p263
      %p265 = scmp.ne.s32.totalorder %s254, %s257
      %p266 = scmp.eq.s32.totalorder %s27, 3
      %p267 = por %p265, %p266
      %p268 = scmp.ne.s32.totalorder %s257, %s258
      %p269 = scmp.eq.s32.totalorder %s27, 0
      %p270 = por %p268, %p269
      %p271 = scmp.ne.s32.totalorder %s257, %s258
      %p272 = scmp.eq.s32.totalorder %s28, 3
      %p273 = por %p271, %p272
      %p275 = scmp.ne.s32.totalorder %s258, %s274
      %p276 = scmp.eq.s32.totalorder %s28, 0
      %p277 = por %p275, %p276
      %p278 = scmp.le.s32.totalorder 1, %s22
      %p279 = scmp.lt.s32.totalorder %s22, 5
      %p280 = pnand %p278, %p279
      %p281 = pneg %p280
      // Predicated region
      $region9: #{tpu_custom_call.1} parent=5 // pred_check
        _
      $region10: #{tpu_custom_call.1} parent=5 // pred_check_branch
        %283 = sbr.rel (%p280) target = $region12
      $region11: #{tpu_custom_call.1} parent=5 // pred_region
        %s284 = ssub.s32 %s22, 1
        // Predicated region
        $region13: #{tpu_custom_call.1} parent=11 // pred_check
          %p285 = pneg %p111
        $region14: #{tpu_custom_call.1} parent=11 // pred_check_branch
          %287 = sbr.rel (%p285) target = $region16
        $region15: #{tpu_custom_call.1} parent=11 // pred_region
          _
        $region16: #{tpu_custom_call.1} parent=11 // pred_fallthru
          _
        // Predicated region
        $region17: #{tpu_custom_call.1} parent=11 // pred_check
          %p288 = pneg %p132
        $region18: #{tpu_custom_call.1} parent=11 // pred_check_branch
          %290 = sbr.rel (%p288) target = $region20
        $region19: #{tpu_custom_call.1} parent=11 // pred_region
          _
        $region20: #{tpu_custom_call.1} parent=11 // pred_fallthru
          _
        // Predicated region
        $region21: #{tpu_custom_call.1} parent=11 // pred_check
          %p291 = pneg %p153
        $region22: #{tpu_custom_call.1} parent=11 // pred_check_branch
          %293 = sbr.rel (%p291) target = $region24
        $region23: #{tpu_custom_call.1} parent=11 // pred_region
          _
        $region24: #{tpu_custom_call.1} parent=11 // pred_fallthru
          _
        // Predicated region
        $region25: #{tpu_custom_call.1} parent=11 // pred_check
          %p294 = pneg %p174
        $region26: #{tpu_custom_call.1} parent=11 // pred_check_branch
          %296 = sbr.rel (%p294) target = $region28
        $region27: #{tpu_custom_call.1} parent=11 // pred_region
          _
        $region28: #{tpu_custom_call.1} parent=11 // pred_fallthru
          _
        // Predicated region
        $region29: #{tpu_custom_call.1} parent=11 // pred_check
          %p297 = pneg %p195
        $region30: #{tpu_custom_call.1} parent=11 // pred_check_branch
          %299 = sbr.rel (%p297) target = $region32
        $region31: #{tpu_custom_call.1} parent=11 // pred_region
          _
        $region32: #{tpu_custom_call.1} parent=11 // pred_fallthru
          _
        // Predicated region
        $region33: #{tpu_custom_call.1} parent=11 // pred_check
          %p300 = pneg %p216
        $region34: #{tpu_custom_call.1} parent=11 // pred_check_branch
          %302 = sbr.rel (%p300) target = $region36
        $region35: #{tpu_custom_call.1} parent=11 // pred_region
          _
        $region36: #{tpu_custom_call.1} parent=11 // pred_fallthru
          _
      $region12: #{tpu_custom_call.1} parent=5 // pred_fallthru
        _
      %p303 = scmp.lt.s32.totalorder %s22, 4
      // Predicated region
      $region37: #{tpu_custom_call.1} parent=5 // pred_check
        %p304 = pneg %p303
      $region38: #{tpu_custom_call.1} parent=5 // pred_check_branch
        %306 = sbr.rel (%p304) target = $region40
      $region39: #{tpu_custom_call.1} parent=5 // pred_region
        // Predicated region
        $region41: #{tpu_custom_call.1} parent=39 // pred_check
          %p307 = pneg %p56
        $region42: #{tpu_custom_call.1} parent=39 // pred_check_branch
          %309 = sbr.rel (%p307) target = $region44
        $region43: #{tpu_custom_call.1} parent=39 // pred_region
          %s310 = smul.u32 16, %s30
          %p311 = scmp.lt.s32.totalorder %s29, 1
          %s312 = scalar_select %p311, %s29, 1
          %p313 = scmp.lt.s32.totalorder %s310, 31
          %s314 = scalar_select %p313, %s310, 31
          %s315 = smul.addr %s312, 32
          %s316 = sadd.s32 %s314, %s315
          %s317 = smul.addr %s316, 4
          %s318 = scalar_lea.vmem %s0, %s317
          %s319 = smul.u32 16, %s30
        $region44: #{tpu_custom_call.1} parent=39 // pred_fallthru
          _
        // Predicated region
        $region45: #{tpu_custom_call.1} parent=39 // pred_check
          %p320 = pneg %p84
        $region46: #{tpu_custom_call.1} parent=39 // pred_check_branch
          %322 = sbr.rel (%p320) target = $region48
        $region47: #{tpu_custom_call.1} parent=39 // pred_region
          %s323 = smul.u32 16, %s30
          %p324 = scmp.lt.s32.totalorder %s29, 1
          %s325 = scalar_select %p324, %s29, 1
          %p326 = scmp.lt.s32.totalorder %s323, 31
          %s327 = scalar_select %p326, %s323, 31
          %s328 = smul.addr %s325, 32
          %s329 = sadd.s32 %s327, %s328
          %s330 = smul.addr %s329, 4
          %s331 = scalar_lea.vmem %s1, %s330
          %s332 = smul.u32 16, %s30
        $region48: #{tpu_custom_call.1} parent=39 // pred_fallthru
          _
      $region40: #{tpu_custom_call.1} parent=5 // pred_fallthru
        _
      %p333 = scmp.le.s32.totalorder 1, %s22
      %p334 = scmp.lt.s32.totalorder %s22, 5
      %p335 = pnand %p333, %p334
      %p336 = pneg %p335
      // Predicated region
      $region49: #{tpu_custom_call.1} parent=5 // pred_check
        _
      $region50: #{tpu_custom_call.1} parent=5 // pred_check_branch
        %338 = sbr.rel (%p335) target = $region52
      $region51: #{tpu_custom_call.1} parent=5 // pred_region
        %s339 = ssub.s32 %s22, 1
        %s340 = smul.u32 16, %s32
        %p341 = scmp.lt.s32.totalorder %s31, 1
        %s342 = scalar_select %p341, %s31, 1
        %p343 = scmp.lt.s32.totalorder %s340, 31
        %s344 = scalar_select %p343, %s340, 31
        %s345 = smul.addr %s342, 32
        %s346 = sadd.s32 %s344, %s345
        %s347 = smul.addr %s346, 4
        %s348 = scalar_lea.vmem %s0, %s347
        %p349 = pneg %p62
        %p350 = pneg %p59
        %s351 = smul.u32 16, %s32
        %p352 = scmp.lt.s32.totalorder %s31, 1
        %s353 = scalar_select %p352, %s31, 1
        %p354 = scmp.lt.s32.totalorder %s351, 31
        %s355 = scalar_select %p354, %s351, 31
        %s356 = smul.addr %s353, 32
        %s357 = sadd.s32 %s355, %s356
        %s358 = smul.addr %s357, 4
        %s359 = scalar_lea.vmem %s1, %s358
        %p360 = pneg %p90
        %p361 = pneg %p87
        %p362 = pneg %p111
        %p363 = pneg %p108
        %p364 = pneg %p132
        %p365 = pneg %p129
        %p366 = pneg %p153
        %p367 = pneg %p150
        %p368 = pneg %p174
        %p369 = pneg %p171
        %p370 = pneg %p195
        %p371 = pneg %p192
        %p372 = pneg %p216
        %p373 = pneg %p213
        %p374 = pneg %p244
        %p375 = pneg %p241
        %s376 = sand.u32 %s231, 1
        %s377 = scalar_lea.sflag [#allocation3], %s376
        %s378 = sand.u32 %s231, 1
        %s379 = smul.addr %s378, 64
        %s380 = scalar_lea.vmem [#allocation2], %s379
        %p381 = pneg %p270
        %p382 = pneg %p267
        %s383 = sand.u32 %s257, 1
        %s384 = scalar_lea.sflag [#allocation5], %s383
        %s385 = sand.u32 %s257, 1
        %s386 = scalar_lea.vmem [#allocation4], %s385
        %s387 = smul.u32 16, %s32
        %p388 = scmp.lt.s32.totalorder %s31, 1
        %s389 = scalar_select %p388, %s31, 1
        %p390 = scmp.lt.s32.totalorder %s387, 31
        %s391 = scalar_select %p390, %s387, 31
        %s392 = smul.addr %s389, 32
        %s393 = sadd.s32 %s391, %s392
        %s394 = smul.addr %s393, 4
        %s395 = scalar_lea.vmem %s0, %s394
        %s396 = smul.u32 16, %s32
        %s397 = smul.u32 16, %s32
        %p398 = scmp.lt.s32.totalorder %s31, 1
        %s399 = scalar_select %p398, %s31, 1
        %p400 = scmp.lt.s32.totalorder %s397, 31
        %s401 = scalar_select %p400, %s397, 31
        %s402 = smul.addr %s399, 32
        %s403 = sadd.s32 %s401, %s402
        %s404 = smul.addr %s403, 4
        %s405 = scalar_lea.vmem %s1, %s404
        %s406 = smul.u32 16, %s32
        %s407 = smul.u32 16, %s32
        %v409 = vld [vmem:[%s395] sm:$0xf]
        %v410 = vld [vmem:[%s395 + $0x4] sm:$0xf]
        %v411 = vld [vmem:[%s395 + $0x8] sm:$0xf]
        %v412 = vld [vmem:[%s395 + $0xc] sm:$0xf]
        %v413 = vld [vmem:[%s395 + $0x10] sm:$0xf]
        %v414 = vld [vmem:[%s395 + $0x14] sm:$0xf]
        %v415 = vld [vmem:[%s395 + $0x18] sm:$0xf]
        %v416 = vld [vmem:[%s395 + $0x1c] sm:$0xf]
        %v417 = vld [vmem:[%s395 + $0x20] sm:$0xf]
        %v418 = vld [vmem:[%s395 + $0x24] sm:$0xf]
        %v419 = vld [vmem:[%s395 + $0x28] sm:$0xf]
        %v420 = vld [vmem:[%s395 + $0x2c] sm:$0xf]
        %v421 = vld [vmem:[%s395 + $0x30] sm:$0xf]
        %v422 = vld [vmem:[%s395 + $0x34] sm:$0xf]
        %v423 = vld [vmem:[%s395 + $0x38] sm:$0xf]
        %v424 = vld [vmem:[%s395 + $0x3c] sm:$0xf]
        %v425 = vld [vmem:[%s2] sm:$0xf]
        %v426 = vld [vmem:[%s2 + $0x4] sm:$0xf]
        %v427 = vld [vmem:[%s405] sm:$0xf]
        %v428 = vld [vmem:[%s405 + $0x4] sm:$0xf]
        %v429 = vld [vmem:[%s405 + $0x8] sm:$0xf]
        %v430 = vld [vmem:[%s405 + $0xc] sm:$0xf]
        %v431 = vld [vmem:[%s405 + $0x10] sm:$0xf]
        %v432 = vld [vmem:[%s405 + $0x14] sm:$0xf]
        %v433 = vld [vmem:[%s405 + $0x18] sm:$0xf]
        %v434 = vld [vmem:[%s405 + $0x1c] sm:$0xf]
        %v435 = vld [vmem:[%s405 + $0x20] sm:$0xf]
        %v436 = vld [vmem:[%s405 + $0x24] sm:$0xf]
        %v437 = vld [vmem:[%s405 + $0x28] sm:$0xf]
        %v438 = vld [vmem:[%s405 + $0x2c] sm:$0xf]
        %v439 = vld [vmem:[%s405 + $0x30] sm:$0xf]
        %v440 = vld [vmem:[%s405 + $0x34] sm:$0xf]
        %v441 = vld [vmem:[%s405 + $0x38] sm:$0xf]
        %v442 = vld [vmem:[%s405 + $0x3c] sm:$0xf]
        %v443 = vld [vmem:[%s3] sm:$0xf]
        %v444 = vld [vmem:[%s3 + $0x4] sm:$0xf]
        %v461 = vunpack.c.l.b16 %v427
        %v462 = vunpack.c.l.b16 %v428
        %v463 = vunpack.c.l.b16 %v429
        %v464 = vunpack.c.l.b16 %v430
        %v465 = vunpack.c.l.b16 %v431
        %v466 = vunpack.c.l.b16 %v432
        %v467 = vunpack.c.l.b16 %v433
        %v468 = vunpack.c.l.b16 %v434
        %v469 = vunpack.c.l.b16 %v435
        %v470 = vunpack.c.l.b16 %v436
        %v471 = vunpack.c.l.b16 %v437
        %v472 = vunpack.c.l.b16 %v438
        %v473 = vunpack.c.l.b16 %v439
        %v474 = vunpack.c.l.b16 %v440
        %v475 = vunpack.c.l.b16 %v441
        %v476 = vunpack.c.l.b16 %v442
        %v477 = vpack.c.b16 %v462, %v461
        %v478 = vpack.c.b16 %v464, %v463
        %v479 = vpack.c.b16 %v466, %v465
        %v480 = vpack.c.b16 %v468, %v467
        %v481 = vpack.c.b16 %v470, %v469
        %v482 = vpack.c.b16 %v472, %v471
        %v483 = vpack.c.b16 %v474, %v473
        %v484 = vpack.c.b16 %v476, %v475
        %v487 = vunpack.c.l.b16 %v443
        %v488 = vunpack.c.l.b16 %v444
        %v489 = vpack.c.b16 %v488, %v487
        %vm491 = vcmask 130048
        %v493 = vsel %vm491, %v477, 0
        %v496 = vsel %vm491, %v478, 0
        %v499 = vsel %vm491, %v479, 0
        %v502 = vsel %vm491, %v480, 0
        %v505 = vsel %vm491, %v481, 0
        %v508 = vsel %vm491, %v482, 0
        %v511 = vsel %vm491, %v483, 0
        %v514 = vsel %vm491, %v484, 0
        %516 = vmatprep.subr.bf16.mxu0 0
        %517 = vmatpush1.bf16.msra.mxu0 0
        %518 = vmatprep.subr.bf16.mxu0 0
        %519 = vmatpush1.bf16.msra.mxu0 0
        %520 = vmatprep.subr.bf16.mxu0 0
        %521 = vmatpush1.bf16.msra.mxu0 0
        %522 = vmatprep.subr.bf16.mxu0 0
        %523 = vmatpush1.bf16.msra.mxu0 0
        %524 = vmatprep.subr.bf16.mxu0 0
        %525 = vmatpush1.bf16.msra.mxu0 0
        %526 = vmatprep.subr.bf16.mxu0 0
        %527 = vmatpush1.bf16.msra.mxu0 0
        %528 = vmatprep.subr.bf16.mxu0 0
        %529 = vmatpush1.bf16.msra.mxu0 0
        %530 = vmatprep.subr.bf16.mxu0 0
        %531 = vmatpush1.bf16.msra.mxu0 %v489
        %532 = vmatprep.subr.bf16.mxu0 0
        %533 = vmatpush2.bf16.msra.mxu0 0
        %534 = vmatprep.subr.bf16.mxu0 0
        %535 = vmatpush2.bf16.msra.mxu0 0
        %536 = vmatprep.subr.bf16.mxu0 0
        %537 = vmatpush2.bf16.msra.mxu0 0
        %538 = vmatprep.subr.bf16.mxu0 0
        %539 = vmatpush2.bf16.msra.mxu0 0
        %540 = vmatprep.subr.bf16.mxu0 0
        %541 = vmatpush2.bf16.msra.mxu0 0
        %542 = vmatprep.subr.bf16.mxu0 0
        %543 = vmatpush2.bf16.msra.mxu0 0
        %544 = vmatprep.subr.bf16.mxu0 0
        %545 = vmatpush2.bf16.msra.mxu0 0
        %546 = vmatprep.subr.bf16.mxu0 0
        %547 = vmatpush2.bf16.msra.mxu0 0
        %548 = vmatprep.mubr.bf16.mxu0 0
        %549 = vmatmul.mubr.bf16.gmra.mxu0 %v493
        %v550 = vpop.f32.mrf.mxu0
        %v551 = vadd.f32 0.0, %v550
        %v552 = vpop.f32.mrf.mxu0
        %v553 = vpop.f32.mrf.mxu0
        %v554 = vadd.f32 0.0, %v553
        %v555 = vpop.f32.mrf.mxu0
        %556 = vmatprep.mubr.bf16.mxu0 0
        %557 = vmatmul.mubr.bf16.gmra.mxu0 %v496
        %v558 = vpop.f32.mrf.mxu0
        %v559 = vadd.f32 0.0, %v558
        %v560 = vpop.f32.mrf.mxu0
        %v561 = vpop.f32.mrf.mxu0
        %v562 = vadd.f32 0.0, %v561
        %v563 = vpop.f32.mrf.mxu0
        %564 = vmatprep.mubr.bf16.mxu0 0
        %565 = vmatmul.mubr.bf16.gmra.mxu0 %v499
        %v566 = vpop.f32.mrf.mxu0
        %v567 = vadd.f32 0.0, %v566
        %v568 = vpop.f32.mrf.mxu0
        %v569 = vpop.f32.mrf.mxu0
        %v570 = vadd.f32 0.0, %v569
        %v571 = vpop.f32.mrf.mxu0
        %572 = vmatprep.mubr.bf16.mxu0 0
        %573 = vmatmul.mubr.bf16.gmra.mxu0 %v502
        %v574 = vpop.f32.mrf.mxu0
        %v575 = vadd.f32 0.0, %v574
        %v576 = vpop.f32.mrf.mxu0
        %v577 = vpop.f32.mrf.mxu0
        %v578 = vadd.f32 0.0, %v577
        %v579 = vpop.f32.mrf.mxu0
        %580 = vmatprep.mubr.bf16.mxu0 0
        %581 = vmatmul.mubr.bf16.gmra.mxu0 %v505
        %v582 = vpop.f32.mrf.mxu0
        %v583 = vadd.f32 0.0, %v582
        %v584 = vpop.f32.mrf.mxu0
        %v585 = vpop.f32.mrf.mxu0
        %v586 = vadd.f32 0.0, %v585
        %v587 = vpop.f32.mrf.mxu0
        %588 = vmatprep.mubr.bf16.mxu0 0
        %589 = vmatmul.mubr.bf16.gmra.mxu0 %v508
        %v590 = vpop.f32.mrf.mxu0
        %v591 = vadd.f32 0.0, %v590
        %v592 = vpop.f32.mrf.mxu0
        %v593 = vpop.f32.mrf.mxu0
        %v594 = vadd.f32 0.0, %v593
        %v595 = vpop.f32.mrf.mxu0
        %596 = vmatprep.mubr.bf16.mxu0 0
        %597 = vmatmul.mubr.bf16.gmra.mxu0 %v511
        %v598 = vpop.f32.mrf.mxu0
        %v599 = vadd.f32 0.0, %v598
        %v600 = vpop.f32.mrf.mxu0
        %v601 = vpop.f32.mrf.mxu0
        %v602 = vadd.f32 0.0, %v601
        %v603 = vpop.f32.mrf.mxu0
        %604 = vmatprep.mubr.bf16.mxu0 0
        %605 = vmatmul.mubr.bf16.gmra.mxu0 %v514
        %v606 = vpop.f32.mrf.mxu0
        %v607 = vadd.f32 0.0, %v606
        %v608 = vpop.f32.mrf.mxu0
        %v609 = vpop.f32.mrf.mxu0
        %v610 = vadd.f32 0.0, %v609
        %v611 = vpop.f32.mrf.mxu0
        %612 = vdwg.mxu0
        %v629 = vunpack.c.l.b16 %v409
        %v630 = vunpack.c.l.b16 %v410
        %v631 = vunpack.c.l.b16 %v411
        %v632 = vunpack.c.l.b16 %v412
        %v633 = vunpack.c.l.b16 %v413
        %v634 = vunpack.c.l.b16 %v414
        %v635 = vunpack.c.l.b16 %v415
        %v636 = vunpack.c.l.b16 %v416
        %v637 = vunpack.c.l.b16 %v417
        %v638 = vunpack.c.l.b16 %v418
        %v639 = vunpack.c.l.b16 %v419
        %v640 = vunpack.c.l.b16 %v420
        %v641 = vunpack.c.l.b16 %v421
        %v642 = vunpack.c.l.b16 %v422
        %v643 = vunpack.c.l.b16 %v423
        %v644 = vunpack.c.l.b16 %v424
        %v645 = vpack.c.b16 %v630, %v629
        %v646 = vpack.c.b16 %v632, %v631
        %v647 = vpack.c.b16 %v634, %v633
        %v648 = vpack.c.b16 %v636, %v635
        %v649 = vpack.c.b16 %v638, %v637
        %v650 = vpack.c.b16 %v640, %v639
        %v651 = vpack.c.b16 %v642, %v641
        %v652 = vpack.c.b16 %v644, %v643
        %v655 = vunpack.c.l.b16 %v425
        %v656 = vunpack.c.l.b16 %v426
        %v657 = vpack.c.b16 %v656, %v655
        %v660 = vsel %vm491, %v645, 0
        %v663 = vsel %vm491, %v646, 0
        %v666 = vsel %vm491, %v647, 0
        %v669 = vsel %vm491, %v648, 0
        %v672 = vsel %vm491, %v649, 0
        %v675 = vsel %vm491, %v650, 0
        %v678 = vsel %vm491, %v651, 0
        %v681 = vsel %vm491, %v652, 0
        %683 = vmatprep.subr.bf16.mxu0 0
        %684 = vmatpush1.bf16.msra.mxu0 0
        %685 = vmatprep.subr.bf16.mxu0 0
        %686 = vmatpush1.bf16.msra.mxu0 0
        %687 = vmatprep.subr.bf16.mxu0 0
        %688 = vmatpush1.bf16.msra.mxu0 0
        %689 = vmatprep.subr.bf16.mxu0 0
        %690 = vmatpush1.bf16.msra.mxu0 0
        %691 = vmatprep.subr.bf16.mxu0 0
        %692 = vmatpush1.bf16.msra.mxu0 0
        %693 = vmatprep.subr.bf16.mxu0 0
        %694 = vmatpush1.bf16.msra.mxu0 0
        %695 = vmatprep.subr.bf16.mxu0 0
        %696 = vmatpush1.bf16.msra.mxu0 0
        %697 = vmatprep.subr.bf16.mxu0 0
        %698 = vmatpush1.bf16.msra.mxu0 %v657
        %699 = vmatprep.subr.bf16.mxu0 0
        %700 = vmatpush2.bf16.msra.mxu0 0
        %701 = vmatprep.subr.bf16.mxu0 0
        %702 = vmatpush2.bf16.msra.mxu0 0
        %703 = vmatprep.subr.bf16.mxu0 0
        %704 = vmatpush2.bf16.msra.mxu0 0
        %705 = vmatprep.subr.bf16.mxu0 0
        %706 = vmatpush2.bf16.msra.mxu0 0
        %707 = vmatprep.subr.bf16.mxu0 0
        %708 = vmatpush2.bf16.msra.mxu0 0
        %709 = vmatprep.subr.bf16.mxu0 0
        %710 = vmatpush2.bf16.msra.mxu0 0
        %711 = vmatprep.subr.bf16.mxu0 0
        %712 = vmatpush2.bf16.msra.mxu0 0
        %713 = vmatprep.subr.bf16.mxu0 0
        %714 = vmatpush2.bf16.msra.mxu0 0
        %715 = vmatprep.mubr.bf16.mxu0 0
        %716 = vmatmul.mubr.bf16.gmra.mxu0 %v660
        %v717 = vpop.f32.mrf.mxu0
        %v718 = vadd.f32 %v551, %v717
        %v719 = vpop.f32.mrf.mxu0
        %v720 = vpop.f32.mrf.mxu0
        %v721 = vadd.f32 %v554, %v720
        %v722 = vpop.f32.mrf.mxu0
        %723 = vmatprep.mubr.bf16.mxu0 0
        %724 = vmatmul.mubr.bf16.gmra.mxu0 %v663
        %v725 = vpop.f32.mrf.mxu0
        %v726 = vadd.f32 %v559, %v725
        %v727 = vpop.f32.mrf.mxu0
        %v728 = vpop.f32.mrf.mxu0
        %v729 = vadd.f32 %v562, %v728
        %v730 = vpop.f32.mrf.mxu0
        %731 = vmatprep.mubr.bf16.mxu0 0
        %732 = vmatmul.mubr.bf16.gmra.mxu0 %v666
        %v733 = vpop.f32.mrf.mxu0
        %v734 = vadd.f32 %v567, %v733
        %v735 = vpop.f32.mrf.mxu0
        %v736 = vpop.f32.mrf.mxu0
        %v737 = vadd.f32 %v570, %v736
        %v738 = vpop.f32.mrf.mxu0
        %739 = vmatprep.mubr.bf16.mxu0 0
        %740 = vmatmul.mubr.bf16.gmra.mxu0 %v669
        %v741 = vpop.f32.mrf.mxu0
        %v742 = vadd.f32 %v575, %v741
        %v743 = vpop.f32.mrf.mxu0
        %v744 = vpop.f32.mrf.mxu0
        %v745 = vadd.f32 %v578, %v744
        %v746 = vpop.f32.mrf.mxu0
        %747 = vmatprep.mubr.bf16.mxu0 0
        %748 = vmatmul.mubr.bf16.gmra.mxu0 %v672
        %v749 = vpop.f32.mrf.mxu0
        %v750 = vadd.f32 %v583, %v749
        %v751 = vpop.f32.mrf.mxu0
        %v752 = vpop.f32.mrf.mxu0
        %v753 = vadd.f32 %v586, %v752
        %v754 = vpop.f32.mrf.mxu0
        %755 = vmatprep.mubr.bf16.mxu0 0
        %756 = vmatmul.mubr.bf16.gmra.mxu0 %v675
        %v757 = vpop.f32.mrf.mxu0
        %v758 = vadd.f32 %v591, %v757
        %v759 = vpop.f32.mrf.mxu0
        %v760 = vpop.f32.mrf.mxu0
        %v761 = vadd.f32 %v594, %v760
        %v762 = vpop.f32.mrf.mxu0
        %763 = vmatprep.mubr.bf16.mxu0 0
        %764 = vmatmul.mubr.bf16.gmra.mxu0 %v678
        %v765 = vpop.f32.mrf.mxu0
        %v766 = vadd.f32 %v599, %v765
        %v767 = vpop.f32.mrf.mxu0
        %v768 = vpop.f32.mrf.mxu0
        %v769 = vadd.f32 %v602, %v768
        %v770 = vpop.f32.mrf.mxu0
        %771 = vmatprep.mubr.bf16.mxu0 0
        %772 = vmatmul.mubr.bf16.gmra.mxu0 %v681
        %v773 = vpop.f32.mrf.mxu0
        %v774 = vadd.f32 %v607, %v773
        %v775 = vpop.f32.mrf.mxu0
        %v776 = vpop.f32.mrf.mxu0
        %v777 = vadd.f32 %v610, %v776
        %v778 = vpop.f32.mrf.mxu0
        %779 = vdwg.mxu0
        %v780 = vld [vmem:[%s4] sm:$0x1]
        %v782 = vlaneseq
        %v783 = vshrl.u32 %v782, 7
        %v784 = vsub.s32 0, %v783
        %v785 = vrot.slane %v780, %v784
        %v787 = vmul.f32 %v718, %v785
        %v788 = vmul.f32 %v721, %v785
        %v789 = vmul.f32 %v726, %v785
        %v790 = vmul.f32 %v729, %v785
        %v791 = vmul.f32 %v734, %v785
        %v792 = vmul.f32 %v737, %v785
        %v793 = vmul.f32 %v742, %v785
        %v794 = vmul.f32 %v745, %v785
        %v795 = vmul.f32 %v750, %v785
        %v796 = vmul.f32 %v753, %v785
        %v797 = vmul.f32 %v758, %v785
        %v798 = vmul.f32 %v761, %v785
        %v799 = vmul.f32 %v766, %v785
        %v800 = vmul.f32 %v769, %v785
        %v801 = vmul.f32 %v774, %v785
        %v802 = vmul.f32 %v777, %v785
        %v803 = vld [vmem:[%s5] sm:$0x1]
        %v805 = vlaneseq
        %v806 = vshrl.u32 %v805, 7
        %v807 = vsub.s32 0, %v806
        %v808 = vrot.slane %v803, %v807
        %v810 = vadd.f32 %v787, %v808
        %v811 = vadd.f32 %v788, %v808
        %v812 = vadd.f32 %v789, %v808
        %v813 = vadd.f32 %v790, %v808
        %v814 = vadd.f32 %v791, %v808
        %v815 = vadd.f32 %v792, %v808
        %v816 = vadd.f32 %v793, %v808
        %v817 = vadd.f32 %v794, %v808
        %v818 = vadd.f32 %v795, %v808
        %v819 = vadd.f32 %v796, %v808
        %v820 = vadd.f32 %v797, %v808
        %v821 = vadd.f32 %v798, %v808
        %v822 = vadd.f32 %v799, %v808
        %v823 = vadd.f32 %v800, %v808
        %v824 = vadd.f32 %v801, %v808
        %v825 = vadd.f32 %v802, %v808
        %v826 = vmax.f32 %v810, 0.0
        %v827 = vmax.f32 %v811, 0.0
        %v828 = vmax.f32 %v812, 0.0
        %v829 = vmax.f32 %v813, 0.0
        %v830 = vmax.f32 %v814, 0.0
        %v831 = vmax.f32 %v815, 0.0
        %v832 = vmax.f32 %v816, 0.0
        %v833 = vmax.f32 %v817, 0.0
        %v834 = vmax.f32 %v818, 0.0
        %v835 = vmax.f32 %v819, 0.0
        %v836 = vmax.f32 %v820, 0.0
        %v837 = vmax.f32 %v821, 0.0
        %v838 = vmax.f32 %v822, 0.0
        %v839 = vmax.f32 %v823, 0.0
        %v840 = vmax.f32 %v824, 0.0
        %v841 = vmax.f32 %v825, 0.0
        %v842 = vpack.c.bf16 %v827, %v826
        %v843 = vpack.c.bf16 %v829, %v828
        %v844 = vpack.c.bf16 %v831, %v830
        %v845 = vpack.c.bf16 %v833, %v832
        %v846 = vpack.c.bf16 %v835, %v834
        %v847 = vpack.c.bf16 %v837, %v836
        %v848 = vpack.c.bf16 %v839, %v838
        %v849 = vpack.c.bf16 %v841, %v840
        %v858 = vunpack.c.l.b16 %v842
        %v859 = vunpack.c.h.b16 %v842
        %v860 = vunpack.c.l.b16 %v843
        %v861 = vunpack.c.h.b16 %v843
        %v862 = vunpack.c.l.b16 %v844
        %v863 = vunpack.c.h.b16 %v844
        %v864 = vunpack.c.l.b16 %v845
        %v865 = vunpack.c.h.b16 %v845
        %v866 = vunpack.c.l.b16 %v846
        %v867 = vunpack.c.h.b16 %v846
        %v868 = vunpack.c.l.b16 %v847
        %v869 = vunpack.c.h.b16 %v847
        %v870 = vunpack.c.l.b16 %v848
        %v871 = vunpack.c.h.b16 %v848
        %v872 = vunpack.c.l.b16 %v849
        %v873 = vunpack.c.h.b16 %v849
        %v874 = vpack.c.b16 %v858, %v858
        %v875 = vpack.c.b16 %v859, %v859
        %v876 = vpack.c.b16 %v860, %v860
        %v877 = vpack.c.b16 %v861, %v861
        %v878 = vpack.c.b16 %v862, %v862
        %v879 = vpack.c.b16 %v863, %v863
        %v880 = vpack.c.b16 %v864, %v864
        %v881 = vpack.c.b16 %v865, %v865
        %v882 = vpack.c.b16 %v866, %v866
        %v883 = vpack.c.b16 %v867, %v867
        %v884 = vpack.c.b16 %v868, %v868
        %v885 = vpack.c.b16 %v869, %v869
        %v886 = vpack.c.b16 %v870, %v870
        %v887 = vpack.c.b16 %v871, %v871
        %v888 = vpack.c.b16 %v872, %v872
        %v889 = vpack.c.b16 %v873, %v873
        %906 = vst [vmem:[%s380] sm:$0xf] %v874
        %907 = vst [vmem:[%s380 + $0x4] sm:$0xf] %v875
        %908 = vst [vmem:[%s380 + $0x8] sm:$0xf] %v876
        %909 = vst [vmem:[%s380 + $0xc] sm:$0xf] %v877
        %910 = vst [vmem:[%s380 + $0x10] sm:$0xf] %v878
        %911 = vst [vmem:[%s380 + $0x14] sm:$0xf] %v879
        %912 = vst [vmem:[%s380 + $0x18] sm:$0xf] %v880
        %913 = vst [vmem:[%s380 + $0x1c] sm:$0xf] %v881
        %914 = vst [vmem:[%s380 + $0x20] sm:$0xf] %v882
        %915 = vst [vmem:[%s380 + $0x24] sm:$0xf] %v883
        %916 = vst [vmem:[%s380 + $0x28] sm:$0xf] %v884
        %917 = vst [vmem:[%s380 + $0x2c] sm:$0xf] %v885
        %918 = vst [vmem:[%s380 + $0x30] sm:$0xf] %v886
        %919 = vst [vmem:[%s380 + $0x34] sm:$0xf] %v887
        %920 = vst [vmem:[%s380 + $0x38] sm:$0xf] %v888
        %921 = vst [vmem:[%s380 + $0x3c] sm:$0xf] %v889
        %p922 = scmp.eq.s32.totalorder %s32, 0
        // Predicated region
        $region53: #{tpu_custom_call.1} parent=51 // pred_check
          %p923 = pneg %p922
        $region54: #{tpu_custom_call.1} parent=51 // pred_check_branch
          %925 = sbr.rel (%p923) target = $region56
        $region55: #{tpu_custom_call.1} parent=51 // pred_region
          %926 = vst [vmem:[%s386] sm:$0x1] 0.0
        $region56: #{tpu_custom_call.1} parent=51 // pred_fallthru
          _
        %v927 = vld [vmem:[%s386] sm:$0x1]
        %v928 = vadd.f32 %v826, %v827
        %v929 = vadd.f32 %v928, %v828
        %v930 = vadd.f32 %v929, %v829
        %v931 = vadd.f32 %v930, %v830
        %v932 = vadd.f32 %v931, %v831
        %v933 = vadd.f32 %v932, %v832
        %v934 = vadd.f32 %v933, %v833
        %v935 = vadd.f32 %v934, %v834
        %v936 = vadd.f32 %v935, %v835
        %v937 = vadd.f32 %v936, %v836
        %v938 = vadd.f32 %v937, %v837
        %v939 = vadd.f32 %v938, %v838
        %v940 = vadd.f32 %v939, %v839
        %v941 = vadd.f32 %v940, %v840
        %v942 = vadd.f32 %v941, %v841
        %v943 = vrot.slane %v942, 4
        %v944 = vadd.f32 %v942, %v943
        %v945 = vrot.slane %v944, 2
        %v946 = vadd.f32 %v944, %v945
        %v947 = vrot.slane %v946, 1
        %v948 = vadd.f32 %v946, %v947
        %v949 = vadd.f32 %v927, %v948
        %950 = vst [vmem:[%s386] sm:$0x1] %v949
        %p951 = scmp.eq.s32.totalorder %s32, 1
        // Predicated region
        $region57: #{tpu_custom_call.1} parent=51 // pred_check
          %p952 = pneg %p951
        $region58: #{tpu_custom_call.1} parent=51 // pred_check_branch
          %954 = sbr.rel (%p952) target = $region60
        $region59: #{tpu_custom_call.1} parent=51 // pred_region
          %v955 = vld [vmem:[%s386] sm:$0x1]
          %v956 = vmul.f32 %v955, 0.00390625
          %v957 = vld [vmem:[%s6] sm:$0xff]
          %v958 = vld [vmem:[%s6 + $0x8] sm:$0xff]
          %v959 = vld [vmem:[%s6 + $0x10] sm:$0xff]
          %v960 = vld [vmem:[%s6 + $0x18] sm:$0xff]
          %v961 = vld [vmem:[%s6 + $0x20] sm:$0xff]
          %v962 = vld [vmem:[%s6 + $0x28] sm:$0xff]
          %v963 = vld [vmem:[%s6 + $0x30] sm:$0xff]
          %v964 = vld [vmem:[%s6 + $0x38] sm:$0xff]
          %v965 = vld [vmem:[%s6 + $0x40] sm:$0xff]
          %v966 = vld [vmem:[%s6 + $0x48] sm:$0xff]
          %v967 = vld [vmem:[%s6 + $0x50] sm:$0xff]
          %v968 = vld [vmem:[%s6 + $0x58] sm:$0xff]
          %v969 = vld [vmem:[%s6 + $0x60] sm:$0xff]
          %v970 = vld [vmem:[%s6 + $0x68] sm:$0xff]
          %v971 = vld [vmem:[%s6 + $0x70] sm:$0xff]
          %v972 = vld [vmem:[%s6 + $0x78] sm:$0xff]
          %973 = vmatprep.subr.mxu0 0.0
          %974 = vmatpush1.msra.mxu0 %v972
          %975 = vmatprep.subr.mxu0 0.0
          %976 = vmatpush1.msra.mxu0 %v971
          %977 = vmatprep.subr.mxu0 0.0
          %978 = vmatpush1.msra.mxu0 %v970
          %979 = vmatprep.subr.mxu0 0.0
          %980 = vmatpush1.msra.mxu0 %v969
          %981 = vmatprep.subr.mxu0 0.0
          %982 = vmatpush1.msra.mxu0 %v968
          %983 = vmatprep.subr.mxu0 0.0
          %984 = vmatpush1.msra.mxu0 %v967
          %985 = vmatprep.subr.mxu0 0.0
          %986 = vmatpush1.msra.mxu0 %v966
          %987 = vmatprep.subr.mxu0 0.0
          %988 = vmatpush1.msra.mxu0 %v965
          %989 = vmatprep.subr.mxu0 0.0
          %990 = vmatpush1.msra.mxu0 %v964
          %991 = vmatprep.subr.mxu0 0.0
          %992 = vmatpush1.msra.mxu0 %v963
          %993 = vmatprep.subr.mxu0 0.0
          %994 = vmatpush1.msra.mxu0 %v962
          %995 = vmatprep.subr.mxu0 0.0
          %996 = vmatpush1.msra.mxu0 %v961
          %997 = vmatprep.subr.mxu0 0.0
          %998 = vmatpush1.msra.mxu0 %v960
          %999 = vmatprep.subr.mxu0 0.0
          %1000 = vmatpush1.msra.mxu0 %v959
          %1001 = vmatprep.subr.mxu0 0.0
          %1002 = vmatpush1.msra.mxu0 %v958
          %1003 = vmatprep.subr.mxu0 0.0
          %1004 = vmatpush1.msra.mxu0 %v957
          %1005 = vmatprep.subr.mxu0 0.0
          %1006 = vmatpush2.msra.mxu0 0.0
          %1007 = vmatprep.subr.mxu0 0.0
          %1008 = vmatpush2.msra.mxu0 0.0
          %1009 = vmatprep.subr.mxu0 0.0
          %1010 = vmatpush2.msra.mxu0 0.0
          %1011 = vmatprep.subr.mxu0 0.0
          %1012 = vmatpush2.msra.mxu0 0.0
          %1013 = vmatprep.subr.mxu0 0.0
          %1014 = vmatpush2.msra.mxu0 0.0
          %1015 = vmatprep.subr.mxu0 0.0
          %1016 = vmatpush2.msra.mxu0 0.0
          %1017 = vmatprep.subr.mxu0 0.0
          %1018 = vmatpush2.msra.mxu0 0.0
          %1019 = vmatprep.subr.mxu0 0.0
          %1020 = vmatpush2.msra.mxu0 0.0
          %1021 = vmatprep.subr.mxu0 0.0
          %1022 = vmatpush2.msra.mxu0 0.0
          %1023 = vmatprep.subr.mxu0 0.0
          %1024 = vmatpush2.msra.mxu0 0.0
          %1025 = vmatprep.subr.mxu0 0.0
          %1026 = vmatpush2.msra.mxu0 0.0
          %1027 = vmatprep.subr.mxu0 0.0
          %1028 = vmatpush2.msra.mxu0 0.0
          %1029 = vmatprep.subr.mxu0 0.0
          %1030 = vmatpush2.msra.mxu0 0.0
          %1031 = vmatprep.subr.mxu0 0.0
          %1032 = vmatpush2.msra.mxu0 0.0
          %1033 = vmatprep.subr.mxu0 0.0
          %1034 = vmatpush2.msra.mxu0 0.0
          %1035 = vmatprep.subr.mxu0 0.0
          %1036 = vmatpush2.msra.mxu0 0.0
          %1037 = vmatprep.mubr.f32.mxu0 0.0
          %1038 = vmatmul.mubr.f32.gmra.mxu0 %v956
          %v1039 = vpop.f32.mrf.mxu0
          %v1040 = vadd.f32 0.0, %v1039
          %v1041 = vpop.f32.mrf.mxu0
          %1042 = vdwg.mxu0
          %v1043 = vmax.f32 %v1040, 0.0
          %v1044 = vld [vmem:[%s7] sm:$0xff]
          %v1045 = vld [vmem:[%s7 + $0x8] sm:$0xff]
          %v1046 = vld [vmem:[%s7 + $0x10] sm:$0xff]
          %v1047 = vld [vmem:[%s7 + $0x18] sm:$0xff]
          %v1048 = vld [vmem:[%s7 + $0x20] sm:$0xff]
          %v1049 = vld [vmem:[%s7 + $0x28] sm:$0xff]
          %v1050 = vld [vmem:[%s7 + $0x30] sm:$0xff]
          %v1051 = vld [vmem:[%s7 + $0x38] sm:$0xff]
          %v1052 = vld [vmem:[%s7 + $0x40] sm:$0xff]
          %v1053 = vld [vmem:[%s7 + $0x48] sm:$0xff]
          %v1054 = vld [vmem:[%s7 + $0x50] sm:$0xff]
          %v1055 = vld [vmem:[%s7 + $0x58] sm:$0xff]
          %v1056 = vld [vmem:[%s7 + $0x60] sm:$0xff]
          %v1057 = vld [vmem:[%s7 + $0x68] sm:$0xff]
          %v1058 = vld [vmem:[%s7 + $0x70] sm:$0xff]
          %v1059 = vld [vmem:[%s7 + $0x78] sm:$0xff]
          %1060 = vmatprep.subr.mxu0 0.0
          %1061 = vmatpush1.msra.mxu0 %v1059
          %1062 = vmatprep.subr.mxu0 0.0
          %1063 = vmatpush1.msra.mxu0 %v1058
          %1064 = vmatprep.subr.mxu0 0.0
          %1065 = vmatpush1.msra.mxu0 %v1057
          %1066 = vmatprep.subr.mxu0 0.0
          %1067 = vmatpush1.msra.mxu0 %v1056
          %1068 = vmatprep.subr.mxu0 0.0
          %1069 = vmatpush1.msra.mxu0 %v1055
          %1070 = vmatprep.subr.mxu0 0.0
          %1071 = vmatpush1.msra.mxu0 %v1054
          %1072 = vmatprep.subr.mxu0 0.0
          %1073 = vmatpush1.msra.mxu0 %v1053
          %1074 = vmatprep.subr.mxu0 0.0
          %1075 = vmatpush1.msra.mxu0 %v1052
          %1076 = vmatprep.subr.mxu0 0.0
          %1077 = vmatpush1.msra.mxu0 %v1051
          %1078 = vmatprep.subr.mxu0 0.0
          %1079 = vmatpush1.msra.mxu0 %v1050
          %1080 = vmatprep.subr.mxu0 0.0
          %1081 = vmatpush1.msra.mxu0 %v1049
          %1082 = vmatprep.subr.mxu0 0.0
          %1083 = vmatpush1.msra.mxu0 %v1048
          %1084 = vmatprep.subr.mxu0 0.0
          %1085 = vmatpush1.msra.mxu0 %v1047
          %1086 = vmatprep.subr.mxu0 0.0
          %1087 = vmatpush1.msra.mxu0 %v1046
          %1088 = vmatprep.subr.mxu0 0.0
          %1089 = vmatpush1.msra.mxu0 %v1045
          %1090 = vmatprep.subr.mxu0 0.0
          %1091 = vmatpush1.msra.mxu0 %v1044
          %1092 = vmatprep.subr.mxu0 0.0
          %1093 = vmatpush2.msra.mxu0 0.0
          %1094 = vmatprep.subr.mxu0 0.0
          %1095 = vmatpush2.msra.mxu0 0.0
          %1096 = vmatprep.subr.mxu0 0.0
          %1097 = vmatpush2.msra.mxu0 0.0
          %1098 = vmatprep.subr.mxu0 0.0
          %1099 = vmatpush2.msra.mxu0 0.0
          %1100 = vmatprep.subr.mxu0 0.0
          %1101 = vmatpush2.msra.mxu0 0.0
          %1102 = vmatprep.subr.mxu0 0.0
          %1103 = vmatpush2.msra.mxu0 0.0
          %1104 = vmatprep.subr.mxu0 0.0
          %1105 = vmatpush2.msra.mxu0 0.0
          %1106 = vmatprep.subr.mxu0 0.0
          %1107 = vmatpush2.msra.mxu0 0.0
          %1108 = vmatprep.subr.mxu0 0.0
          %1109 = vmatpush2.msra.mxu0 0.0
          %1110 = vmatprep.subr.mxu0 0.0
          %1111 = vmatpush2.msra.mxu0 0.0
          %1112 = vmatprep.subr.mxu0 0.0
          %1113 = vmatpush2.msra.mxu0 0.0
          %1114 = vmatprep.subr.mxu0 0.0
          %1115 = vmatpush2.msra.mxu0 0.0
          %1116 = vmatprep.subr.mxu0 0.0
          %1117 = vmatpush2.msra.mxu0 0.0
          %1118 = vmatprep.subr.mxu0 0.0
          %1119 = vmatpush2.msra.mxu0 0.0
          %1120 = vmatprep.subr.mxu0 0.0
          %1121 = vmatpush2.msra.mxu0 0.0
          %1122 = vmatprep.subr.mxu0 0.0
          %1123 = vmatpush2.msra.mxu0 0.0
          %1124 = vmatprep.mubr.f32.mxu0 0.0
          %1125 = vmatmul.mubr.f32.gmra.mxu0 %v1043
          %v1126 = vpop.f32.mrf.mxu0
          %v1127 = vadd.f32 0.0, %v1126
          %v1128 = vpop.f32.mrf.mxu0
          %1129 = vdwg.mxu0
          %v1130 = vsub.f32 0.0, %v1127
          %v1131 = vmul.f32 %v1130, 1.442695
          %v1132 = vpow.pop %v1131
          %v1133 = vadd.f32 %v1132, 1.0
          %v1134 = vrcp.pop %v1133
          %v1135 = vmul.f32 1.0, %v1134
          %v1136 = vadd.f32 %v1135, 1.0
          %1137 = vst [vmem:[%s386] sm:$0x1] %v1136
        $region60: #{tpu_custom_call.1} parent=51 // pred_fallthru
          _
        %s1138 = sand.u32 %s231, 1
        %s1139 = scalar_lea.sflag [#allocation3], %s1138
        %s1140 = sand.u32 %s231, 1
        %s1141 = smul.addr %s1140, 64
        %s1142 = scalar_lea.vmem [#allocation2], %s1141
        %s1143 = sand.u32 %s257, 1
        %s1144 = scalar_lea.sflag [#allocation5], %s1143
        %s1145 = sand.u32 %s257, 1
        %s1146 = scalar_lea.vmem [#allocation4], %s1145
        // Predicated region
        $region61: #{tpu_custom_call.1} parent=51 // pred_check
          %p1147 = pneg %p241
        $region62: #{tpu_custom_call.1} parent=51 // pred_check_branch
          %1149 = sbr.rel (%p1147) target = $region64
        $region63: #{tpu_custom_call.1} parent=51 // pred_region
          %s1150 = smul.u32 16, %s32
          %s1152 = ssub.s32 1024, 1024
          %1153 = vsyncadd %s1139, %s1152
          %s1154 = smul.addr %s31, 32
          %s1155 = sadd.s32 %s1150, %s1154
          %s1156 = smul.addr %s1155, 64
          %s1157 = scalar_lea.hbm %s8, %s1156
          %s1158 = sshll.u32 %s1142, 4
          %s1159 = int_to_ptr.vmem [resolvable:$true] %s1158
          %1164 = dma.vmem_to_hbm [thread:$0]  %s1159, 1024, %s1157, %s1139, 64, 64, 4
        $region64: #{tpu_custom_call.1} parent=51 // pred_fallthru
          _
        // Predicated region
        $region65: #{tpu_custom_call.1} parent=51 // pred_check
          %p1165 = pneg %p267
        $region66: #{tpu_custom_call.1} parent=51 // pred_check_branch
          %1167 = sbr.rel (%p1165) target = $region68
        $region67: #{tpu_custom_call.1} parent=51 // pred_region
          %s1169 = ssub.s32 16, 16
          %1170 = vsyncadd %s1144, %s1169
          %s1171 = smul.addr %s31, 16
          %s1172 = scalar_lea.hbm %s9, %s1171
          %s1174 = sshll.u32 %s1146, 4
          %s1175 = int_to_ptr.vmem [resolvable:$true] %s1174
          %1177 = dma.vmem_to_hbm [thread:$0]  %s1175, 16, %s1172, %s1144
        $region68: #{tpu_custom_call.1} parent=51 // pred_fallthru
          _
      $region52: #{tpu_custom_call.1} parent=5 // pred_fallthru
        _
      %p1178 = scmp.le.s32.totalorder 2, %s22
      // Predicated region
      $region69: #{tpu_custom_call.1} parent=5 // pred_check
        %p1179 = pneg %p1178
      $region70: #{tpu_custom_call.1} parent=5 // pred_check_branch
        %1181 = sbr.rel (%p1179) target = $region72
      $region71: #{tpu_custom_call.1} parent=5 // pred_region
        %s1182 = ssub.s32 %s22, 2
        // Predicated region
        $region73: #{tpu_custom_call.1} parent=71 // pred_check
          %p1183 = pneg %p247
        $region74: #{tpu_custom_call.1} parent=71 // pred_check_branch
          %1185 = sbr.rel (%p1183) target = $region76
        $region75: #{tpu_custom_call.1} parent=71 // pred_region
          %s1186 = sand.u32 %s232, 1
          %s1187 = scalar_lea.sflag [#allocation3], %s1186
          %s1188 = sand.u32 %s232, 1
          %s1189 = smul.addr %s1188, 64
          %s1190 = scalar_lea.vmem [#allocation2], %s1189
          %1191 = dma.done %s1187, 1024
        $region76: #{tpu_custom_call.1} parent=71 // pred_fallthru
          _
        // Predicated region
        $region77: #{tpu_custom_call.1} parent=71 // pred_check
          %p1192 = pneg %p273
        $region78: #{tpu_custom_call.1} parent=71 // pred_check_branch
          %1194 = sbr.rel (%p1192) target = $region80
        $region79: #{tpu_custom_call.1} parent=71 // pred_region
          %s1195 = sand.u32 %s258, 1
          %s1196 = scalar_lea.sflag [#allocation5], %s1195
          %s1197 = sand.u32 %s258, 1
          %s1198 = scalar_lea.vmem [#allocation4], %s1197
          %1199 = dma.done %s1196, 16
        $region80: #{tpu_custom_call.1} parent=71 // pred_fallthru
          _
      $region72: #{tpu_custom_call.1} parent=5 // pred_fallthru
        _
    $region6: #{tpu_custom_call.1} parent=1 // loop_footer
      %s26 = sadd.s32 1, %s22
    $region7: #{tpu_custom_call.1} parent=1 // loop_footer_branch
      %21 = sbr.rel target = $region3
    $region8: #{tpu_custom_call.1} parent=1 // loop_exit
      _
    %1200 = vsyncpa [#allocation3], 1
    %s1201 = scalar_lea.sflag [#allocation3], 1
    %1202 = vsyncpa %s1201, 1
    %1203 = vsyncpa [#allocation5], 1
    %s1204 = scalar_lea.sflag [#allocation5], 1
    %1205 = vsyncpa %s1204, 1

</llo_original>
